<compile_context>
chip_gen: v7x
topology: tpu7x:2x2x1
jax: 0.10.0
libtpu: 0.0.40
codegen_flags: <defaults>
</compile_context>

<pallas_src>
import functools
import math

import jax
import jax.numpy as jnp
from jax.experimental import pallas as pl
from jax.experimental.pallas import tpu as pltpu


def _round_up(v, m):
    return ((v + m - 1) // m) * m


def _maglinear_kernel(x_ref, w_ref,
                      cos_ref, cosm_ref, rival_ref, xnorm_ref,
                      w_norm_ref,
                      *, tb, l_a, u_a, l_m, u_m, scale, f, thred,
                      easy_margin, x_resident):
    # ---- per-N-tile init: normalize weight columns once, cache bf16 result ----
    # The weight block only changes when the (outer) N-tile index changes, i.e. exactly
    # when the inner batch index wraps to 0, so this runs once per N tile (per core).
    @pl.when(pl.program_id(1) == 0)
    def _():
        w = w_ref[...].astype(jnp.float32)                            # (D, tn)
        col_norm = jnp.sqrt(jnp.sum(w * w, axis=0, keepdims=True))    # (1, tn)
        col_inv = 1.0 / jnp.maximum(col_norm, 1e-12)
        w_norm_ref[...] = (w * col_inv).astype(jnp.bfloat16)          # folded col_inv

    # ---- batch tile of x (either sliced from a fully-resident x or a (tb, D) block) ----
    if x_resident:
        b = pl.program_id(1)
        start = pl.multiple_of(b * tb, tb)
        x = x_ref[pl.ds(start, tb), :].astype(jnp.float32)            # (tb, D)
    else:
        x = x_ref[...].astype(jnp.float32)                            # (tb, D)

    row_norm = jnp.sqrt(jnp.sum(x * x, axis=1, keepdims=True))        # (tb, 1)
    x_norm = jnp.clip(row_norm, l_a, u_a)
    xnorm_ref[...] = x_norm

    # ---- adaptive margin m(x_norm) ----
    # TODO(synk): `m` is an arbitrary callable in the PyTorch forward; fixed here to the
    # canonical MagFace affine margin (l_m..u_m over l_a..u_a), evaluated at trace time.
    ada = (u_m - l_m) / (u_a - l_a) * (x_norm - l_a) + l_m
    cos_m = jnp.cos(ada)                                              # (tb, 1)
    sin_m = jnp.sin(ada)                                              # (tb, 1)

    # ---- F.normalize(x) ----
    row_inv = 1.0 / jnp.maximum(row_norm, 1e-12)
    x_n = (x * row_inv).astype(jnp.bfloat16)                          # (tb, D)

    # ---- MXU matmul against pre-normalized bf16 weight (f32 accumulate) ----
    raw = jnp.dot(x_n, w_norm_ref[...], preferred_element_type=jnp.float32)
    cos_theta = jnp.clip(raw, -1.0, 1.0)                              # (tb, tn)
    cos_ref[...] = (scale * cos_theta).astype(cos_ref.dtype)

    sin_theta = jnp.sqrt(jnp.maximum(1.0 - cos_theta * cos_theta, 0.0))

    if not easy_margin:
        mm = sin_m * ada          # sin(pi - a) * a == sin(a) * a
        threshold = -cos_m        # cos(pi - a)     == -cos(a)

    # ---- target-class margin ----
    cos_theta_m = cos_theta * cos_m - sin_theta * sin_m
    if easy_margin:
        cos_theta_m = jnp.where(cos_theta > 0.0, cos_theta_m, cos_theta)
    else:
        cos_theta_m = jnp.where(cos_theta > threshold, cos_theta_m, cos_theta - mm)
    cosm_ref[...] = (scale * cos_theta_m).astype(cosm_ref.dtype)

    # ---- rival (RPCL) margin: fixed 0.45 * f, scalars folded at trace time ----
    cos_rm = math.cos(0.45 * f)
    sin_rm = math.sin(0.45 * f)
    rival = jnp.clip(cos_theta * cos_rm + sin_theta * sin_rm, -1.0, 1.0)
    if easy_margin:
        rival = jnp.where(cos_theta > thred, rival, cos_theta)
    else:
        rival = jnp.where(cos_theta > threshold, rival, cos_theta - mm)
    rival_ref[...] = (scale * rival).astype(rival_ref.dtype)


def maglinear_rpcl(x, weight, *, l_a, u_a, l_m, u_m,
                   scale=64.0, f=1.0, thred=0.2, easy_margin=True,
                   tb=256, tn=2048, out_dtype=jnp.bfloat16,
                   x_resident=None, vmem_limit_bytes=None):
    """Pallas MagLinear_rpcl forward.  Returns ([cos, cos_m, rival], x_norm)."""
    B, D = x.shape
    D2, N = weight.shape
    assert D == D2

    # Clamp tiles to the (aligned) problem size, then zero-pad to whole tiles.
    # NOTE: callers should prefer tile-divisible shapes / pre-padded params so the pad
    # and the output slice below are no-ops (they are pure wrapper overhead otherwise).
    tb = min(tb, _round_up(B, 8))
    tn = min(tn, _round_up(N, 128))
    Bp = _round_up(B, tb)
    Np = _round_up(N, tn)

    x = x.astype(jnp.float32)
    # Cast the weight to bf16 once here; ideally the parameter is already stored in bf16
    # so this is a no-op (halves the D*N weight HBM stream).
    w_bf16 = weight.astype(jnp.bfloat16)

    x_p = x if Bp == B else jnp.pad(x, ((0, Bp - B), (0, 0)))
    w_p = w_bf16 if Np == N else jnp.pad(w_bf16, ((0, 0), (0, Np - N)))

    if x_resident is None:
        # Keep x fully resident in VMEM (single DMA) unless it is large.
        x_resident = (Bp * D * 4) <= (8 << 20)

    kernel = functools.partial(
        _maglinear_kernel,
        tb=tb,
        l_a=float(l_a), u_a=float(u_a), l_m=float(l_m), u_m=float(u_m),
        scale=float(scale), f=float(f), thred=float(thred),
        easy_margin=bool(easy_margin), x_resident=bool(x_resident))

    grid = (Np // tn, Bp // tb)          # N tiles OUTER, batch tiles INNER

    if x_resident:
        x_spec = pl.BlockSpec((Bp, D), lambda n, b: (0, 0))   # fetched once, stays in VMEM
    else:
        x_spec = pl.BlockSpec((tb, D), lambda n, b: (b, 0))   # per-batch-tile DMA

    big_out_spec = pl.BlockSpec((tb, tn), lambda n, b: (b, n))
    out_shapes = (
        jax.ShapeDtypeStruct((Bp, Np), out_dtype),    # cos_theta
        jax.ShapeDtypeStruct((Bp, Np), out_dtype),    # cos_theta_m
        jax.ShapeDtypeStruct((Bp, Np), out_dtype),    # rival_cos_theta_m
        jax.ShapeDtypeStruct((Bp, 1), jnp.float32),   # x_norm
    )

    outs = pl.pallas_call(
        kernel,
        out_shape=out_shapes,
        grid_spec=pltpu.PrefetchScalarGridSpec(
            num_scalar_prefetch=0,
            grid=grid,
            in_specs=[
                x_spec,
                pl.BlockSpec((D, tn), lambda n, b: (0, n)),   # weight N tile (bf16)
            ],
            out_specs=[big_out_spec, big_out_spec, big_out_spec,
                       pl.BlockSpec((tb, 1), lambda n, b: (b, 0))],
            scratch_shapes=[
                pltpu.VMEM((D, tn), jnp.bfloat16),   # normalized bf16 weight tile
            ],
        ),
        compiler_params=pltpu.CompilerParams(
            dimension_semantics=("parallel", "arbitrary"),
            vmem_limit_bytes=vmem_limit_bytes),
    )(x_p, w_p)

    cos_theta, cos_theta_m, rival, x_norm = outs
    if Bp != B or Np != N:
        cos_theta = cos_theta[:B, :N]
        cos_theta_m = cos_theta_m[:B, :N]
        rival = rival[:B, :N]
        x_norm = x_norm[:B]
    return [cos_theta, cos_theta_m, rival], x_norm


# ----------------------------- references for testing -----------------------------

def _reference_matched(x, weight, *, l_a, u_a, l_m, u_m, scale, f, thred,
                       easy_margin, out_dtype):
    """Pure-JAX reference mirroring the kernel's exact precision path (bf16 MXU)."""
    x = x.astype(jnp.float32)
    w = weight.astype(jnp.bfloat16).astype(jnp.float32)
    col_norm = jnp.sqrt(jnp.sum(w * w, axis=0, keepdims=True))
    w_n = (w * (1.0 / jnp.maximum(col_norm, 1e-12))).astype(jnp.bfloat16)

    row_norm = jnp.sqrt(jnp.sum(x * x, axis=1, keepdims=True))
    x_norm = jnp.clip(row_norm, l_a, u_a)
    ada = (u_m - l_m) / (u_a - l_a) * (x_norm - l_a) + l_m
    cos_m, sin_m = jnp.cos(ada), jnp.sin(ada)
    x_n = (x * (1.0 / jnp.maximum(row_norm, 1e-12))).astype(jnp.bfloat16)

    cos_theta = jnp.clip(jnp.dot(x_n, w_n, preferred_element_type=jnp.float32), -1.0, 1.0)
    sin_theta = jnp.sqrt(jnp.maximum(1.0 - cos_theta * cos_theta, 0.0))
    ctm = cos_theta * cos_m - sin_theta * sin_m
    rival = jnp.clip(cos_theta * math.cos(0.45 * f) + sin_theta * math.sin(0.45 * f),
                     -1.0, 1.0)
    if easy_margin:
        ctm = jnp.where(cos_theta > 0.0, ctm, cos_theta)
        rival = jnp.where(cos_theta > thred, rival, cos_theta)
    else:
        mm = sin_m * ada
        th = -cos_m
        ctm = jnp.where(cos_theta > th, ctm, cos_theta - mm)
        rival = jnp.where(cos_theta > th, rival, cos_theta - mm)
    outs = [(scale * v).astype(out_dtype).astype(jnp.float32)
            for v in (cos_theta, ctm, rival)]
    return outs, x_norm


def _reference_f32(x, weight, *, l_a, u_a, l_m, u_m, scale, f, thred, easy_margin):
    """Pure-JAX f32 reference faithfully mirroring the PyTorch forward."""
    row_norm = jnp.linalg.norm(x, axis=1, keepdims=True)
    x_norm = jnp.clip(row_norm, l_a, u_a)
    ada = (u_m - l_m) / (u_a - l_a) * (x_norm - l_a) + l_m
    cos_m, sin_m = jnp.cos(ada), jnp.sin(ada)
    w_n = weight / jnp.maximum(jnp.linalg.norm(weight, axis=0, keepdims=True), 1e-12)
    x_n = x / jnp.maximum(row_norm, 1e-12)
    cos_theta = jnp.clip(
        jnp.dot(x_n, w_n, precision=jax.lax.Precision.HIGHEST), -1.0, 1.0)
    sin_theta = jnp.sqrt(jnp.maximum(1.0 - cos_theta ** 2, 0.0))
    ctm = cos_theta * cos_m - sin_theta * sin_m
    rctm = jnp.clip(cos_theta * math.cos(0.45 * f) + sin_theta * math.sin(0.45 * f),
                    -1.0, 1.0)
    if easy_margin:
        ctm = jnp.where(cos_theta > 0.0, ctm, cos_theta)
        rctm = jnp.where(cos_theta > thred, rctm, cos_theta)
    else:
        mm = jnp.sin(math.pi - ada) * ada
        th = jnp.cos(math.pi - ada)
        ctm = jnp.where(cos_theta > th, ctm, cos_theta - mm)
        rctm = jnp.where(cos_theta > th, rctm, cos_theta - mm)
    return [scale * cos_theta, scale * ctm, scale * rctm], x_norm


def _frac_bad(a, b, tol):
    a = jnp.asarray(a, jnp.float32)
    b = jnp.asarray(b, jnp.float32)
    return float(jnp.mean((jnp.abs(a - b) > tol).astype(jnp.float32)))


if __name__ == "__main__":
    # Small shapes: batch=8, in_features=32, out_features=128 (num classes).
    B, Din, Dout = 8, 32, 128
    key = jax.random.PRNGKey(0)
    kx, kw = jax.random.split(key)

    x = jax.random.normal(kx, (B, Din), dtype=jnp.float32) * 3.0
    # weight init: uniform(-1,1), columns renormed to unit L2 norm
    # (mimics .renorm_(2, 1, 1e-5).mul_(1e5) in the PyTorch __init__).
    w = jax.random.uniform(kw, (Din, Dout), dtype=jnp.float32, minval=-1.0, maxval=1.0)
    w = w / jnp.maximum(jnp.linalg.norm(w, axis=0, keepdims=True), 1e-12)

    ok = True
    msgs = []
    for easy in (True, False):
        for resident in (True, False):
            hp = dict(l_a=10.0, u_a=110.0, l_m=0.45, u_m=0.8,
                      scale=64.0, f=1.0, thred=0.2, easy_margin=easy)

            (cos_t, cos_tm, rival_tm), x_norm = maglinear_rpcl(
                x, w, x_resident=resident, **hp)
            jax.block_until_ready((cos_t, cos_tm, rival_tm, x_norm))

            # (a) precision-matched reference: tight check (rare bf16 rounding-boundary
            # straddles are allowed via a tiny outlier fraction).
            (mc, mcm, mr), mxn = _reference_matched(x, w, out_dtype=jnp.bfloat16, **hp)
            for name, got, ref in (("cos", cos_t, mc), ("cos_m", cos_tm, mcm),
                                   ("rival", rival_tm, mr)):
                fb = _frac_bad(got, ref, tol=0.5)
                if fb > 0.005:
                    ok = False
                    msgs.append(f"matched {name} easy={easy} resident={resident} frac_bad={fb}")
            if not jnp.allclose(x_norm, mxn, atol=1e-3, rtol=1e-5):
                ok = False
                msgs.append(f"x_norm mismatch easy={easy} resident={resident}")

            # (b) faithful f32 PyTorch reference: loose check (bf16 MXU error is amplified
            # by scale=64 and can flip a handful of `where` boundary elements).
            (fc, fcm, fr), _ = _reference_f32(x, w, **hp)
            for name, got, ref in (("cos", cos_t, fc), ("cos_m", cos_tm, fcm),
                                   ("rival", rival_tm, fr)):
                fb = _frac_bad(got, ref, tol=2.0)
                if fb > 0.03:
                    ok = False
                    msgs.append(f"f32 {name} easy={easy} resident={resident} frac_bad={fb}")

    assert ok, "mismatch vs references: " + "; ".join(msgs)
    print("KERNEL_OK")
</pallas_src>

<mosaic_0001>
module attributes {stable_mosaic.version = 11 : i64} {
  func.func @_maglinear_kernel(%arg0: i32, %arg1: i32, %arg2: memref<8x32xf32, #tpu.memory_space<vmem>>, %arg3: memref<32x128xbf16, #tpu.memory_space<vmem>>, %arg4: memref<8x128xbf16, #tpu.memory_space<vmem>>, %arg5: memref<8x128xbf16, #tpu.memory_space<vmem>>, %arg6: memref<8x128xbf16, #tpu.memory_space<vmem>>, %arg7: memref<8x1xf32, #tpu.memory_space<vmem>>, %arg8: memref<32x128xbf16, #tpu.memory_space<vmem>>) attributes {dimension_semantics = [#tpu.dimension_semantics<parallel>, #tpu.dimension_semantics<arbitrary>], iteration_bounds = array<i64: 1, 1>, scalar_prefetch = 0 : i64, scratch_operands = 1 : i64, tpu.core_type = #tpu.core_type<tc>, window_params = [{pipeline_mode = #tpu.pipeline_mode<synchronous>, transform_indices = @transform_0, window_bounds = array<i64: 8, 32>}, {transform_indices = @transform_1, window_bounds = array<i64: 32, 128>}, {transform_indices = @transform_2, window_bounds = array<i64: 8, 128>}, {transform_indices = @transform_3, window_bounds = array<i64: 8, 128>}, {transform_indices = @transform_4, window_bounds = array<i64: 8, 128>}, {transform_indices = @transform_5, window_bounds = array<i64: 8, 1>}]} {
    %c0_i32 = arith.constant 0 : i32
    %0 = arith.cmpi eq, %arg1, %c0_i32 : i32
    %1 = arith.extui %0 : i1 to i32
    %c0_i32_0 = arith.constant 0 : i32
    %2 = arith.cmpi ne, %1, %c0_i32_0 : i32
    scf.if %2 {
      %c0_32 = arith.constant 0 : index
      %c0_33 = arith.constant 0 : index
      %75 = vector.load %arg3[%c0_32, %c0_33] : memref<32x128xbf16, #tpu.memory_space<vmem>>, vector<32x128xbf16>
      %76 = arith.extf %75 : vector<32x128xbf16> to vector<32x128xf32>
      %77 = arith.mulf %76, %76 : vector<32x128xf32>
      %cst_34 = arith.constant dense<0.000000e+00> : vector<128xf32>
      %78 = vector.multi_reduction <add>, %77, %cst_34 [0] : vector<32x128xf32> to vector<128xf32>
      %79 = vector.shape_cast %78 : vector<128xf32> to vector<1x128xf32>
      %80 = math.sqrt %79 : vector<1x128xf32>
      %cst_35 = arith.constant 9.99999996E-13 : f32
      %81 = vector.broadcast %cst_35 : f32 to vector<1x128xf32>
      %82 = arith.maximumf %80, %81 : vector<1x128xf32>
      %cst_36 = arith.constant 1.000000e+00 : f32
      %83 = vector.broadcast %cst_36 : f32 to vector<1x128xf32>
      %84 = arith.divf %83, %82 : vector<1x128xf32>
      %85 = vector.broadcast %84 : vector<1x128xf32> to vector<32x128xf32>
      %86 = arith.mulf %76, %85 : vector<32x128xf32>
      %87 = arith.truncf %86 : vector<32x128xf32> to vector<32x128xbf16>
      %c0_37 = arith.constant 0 : index
      %c0_38 = arith.constant 0 : index
      %88 = vector.load %arg8[%c0_37, %c0_38] : memref<32x128xbf16, #tpu.memory_space<vmem>>, vector<32x128xbf16>
      tpu.vector_store %arg8[%c0_37, %c0_38], %87 {strides = array<i32>} : memref<32x128xbf16, #tpu.memory_space<vmem>>, vector<32x128xbf16>,
    } else {
    }
    %c8_i32 = arith.constant 8 : i32
    %3 = arith.muli %arg1, %c8_i32 : i32
    %4 = tpu.assume_multiple %3, 8 : i32
    %5 = arith.index_cast %4 : i32 to index
    %c0 = arith.constant 0 : index
    %6 = vector.load %arg2[%5, %c0] : memref<8x32xf32, #tpu.memory_space<vmem>>, vector<8x32xf32>
    %7 = arith.mulf %6, %6 : vector<8x32xf32>
    %cst = arith.constant dense<0.000000e+00> : vector<8xf32>
    %8 = vector.multi_reduction <add>, %7, %cst [1] : vector<8x32xf32> to vector<8xf32>
    %9 = vector.shape_cast %8 : vector<8xf32> to vector<8x1xf32>
    %10 = math.sqrt %9 : vector<8x1xf32>
    %cst_1 = arith.constant 1.000000e+01 : f32
    %cst_2 = arith.constant 1.100000e+02 : f32
    %11 = vector.broadcast %cst_1 : f32 to vector<8x1xf32>
    %12 = arith.maximumf %11, %10 : vector<8x1xf32>
    %13 = vector.broadcast %cst_2 : f32 to vector<8x1xf32>
    %14 = arith.minimumf %13, %12 : vector<8x1xf32>
    %c0_3 = arith.constant 0 : index
    %c0_4 = arith.constant 0 : index
    %15 = vector.load %arg7[%c0_3, %c0_4] : memref<8x1xf32, #tpu.memory_space<vmem>>, vector<8x1xf32>
    tpu.vector_store %arg7[%c0_3, %c0_4], %14 {strides = array<i32>} : memref<8x1xf32, #tpu.memory_space<vmem>>, vector<8x1xf32>,
    %cst_5 = arith.constant 1.000000e+01 : f32
    %16 = vector.broadcast %cst_5 : f32 to vector<8x1xf32>
    %17 = arith.subf %14, %16 : vector<8x1xf32>
    %cst_6 = arith.constant 3.500000e-03 : f32
    %18 = vector.broadcast %cst_6 : f32 to vector<8x1xf32>
    %19 = arith.mulf %18, %17 : vector<8x1xf32>
    %cst_7 = arith.constant 4.500000e-01 : f32
    %20 = vector.broadcast %cst_7 : f32 to vector<8x1xf32>
    %21 = arith.addf %19, %20 : vector<8x1xf32>
    %22 = math.cos %21 : vector<8x1xf32>
    %23 = math.sin %21 : vector<8x1xf32>
    %cst_8 = arith.constant 9.99999996E-13 : f32
    %24 = vector.broadcast %cst_8 : f32 to vector<8x1xf32>
    %25 = arith.maximumf %10, %24 : vector<8x1xf32>
    %cst_9 = arith.constant 1.000000e+00 : f32
    %26 = vector.broadcast %cst_9 : f32 to vector<8x1xf32>
    %27 = arith.divf %26, %25 : vector<8x1xf32>
    %28 = vector.broadcast %27 : vector<8x1xf32> to vector<8x32xf32>
    %29 = arith.mulf %6, %28 : vector<8x32xf32>
    %30 = arith.truncf %29 : vector<8x32xf32> to vector<8x32xbf16>
    %c0_10 = arith.constant 0 : index
    %c0_11 = arith.constant 0 : index
    %31 = vector.load %arg8[%c0_10, %c0_11] : memref<32x128xbf16, #tpu.memory_space<vmem>>, vector<32x128xbf16>
    %cst_12 = arith.constant dense<0.000000e+00> : vector<8x128xf32>
    %32 = tpu.matmul %30, %31, %cst_12 {dimension_numbers = #tpu.dot_dimension_numbers<[1], [0], [0], [1], [0, 0, 1, 1], [], []>} : vector<8x32xbf16>, vector<32x128xbf16>, vector<8x128xf32> -> vector<8x128xf32>
    %cst_13 = arith.constant -1.000000e+00 : f32
    %cst_14 = arith.constant 1.000000e+00 : f32
    %33 = vector.broadcast %cst_13 : f32 to vector<8x128xf32>
    %34 = arith.maximumf %33, %32 : vector<8x128xf32>
    %35 = vector.broadcast %cst_14 : f32 to vector<8x128xf32>
    %36 = arith.minimumf %35, %34 : vector<8x128xf32>
    %cst_15 = arith.constant 6.400000e+01 : f32
    %37 = vector.broadcast %cst_15 : f32 to vector<8x128xf32>
    %38 = arith.mulf %37, %36 : vector<8x128xf32>
    %39 = arith.truncf %38 : vector<8x128xf32> to vector<8x128xbf16>
    %c0_16 = arith.constant 0 : index
    %c0_17 = arith.constant 0 : index
    %40 = vector.load %arg4[%c0_16, %c0_17] : memref<8x128xbf16, #tpu.memory_space<vmem>>, vector<8x128xbf16>
    tpu.vector_store %arg4[%c0_16, %c0_17], %39 {strides = array<i32>} : memref<8x128xbf16, #tpu.memory_space<vmem>>, vector<8x128xbf16>,
    %41 = arith.mulf %36, %36 : vector<8x128xf32>
    %cst_18 = arith.constant 1.000000e+00 : f32
    %42 = vector.broadcast %cst_18 : f32 to vector<8x128xf32>
    %43 = arith.subf %42, %41 : vector<8x128xf32>
    %cst_19 = arith.constant 0.000000e+00 : f32
    %44 = vector.broadcast %cst_19 : f32 to vector<8x128xf32>
    %45 = arith.maximumf %43, %44 : vector<8x128xf32>
    %46 = math.sqrt %45 : vector<8x128xf32>
    %47 = vector.broadcast %22 : vector<8x1xf32> to vector<8x128xf32>
    %48 = arith.mulf %36, %47 : vector<8x128xf32>
    %49 = vector.broadcast %23 : vector<8x1xf32> to vector<8x128xf32>
    %50 = arith.mulf %46, %49 : vector<8x128xf32>
    %51 = arith.subf %48, %50 : vector<8x128xf32>
    %cst_20 = arith.constant 0.000000e+00 : f32
    %52 = vector.broadcast %cst_20 : f32 to vector<8x128xf32>
    %53 = arith.cmpf ogt, %36, %52 : vector<8x128xf32>
    %54 = arith.select %53, %51, %36 : vector<8x128xi1>, vector<8x128xf32>
    %cst_21 = arith.constant 6.400000e+01 : f32
    %55 = vector.broadcast %cst_21 : f32 to vector<8x128xf32>
    %56 = arith.mulf %55, %54 : vector<8x128xf32>
    %57 = arith.truncf %56 : vector<8x128xf32> to vector<8x128xbf16>
    %c0_22 = arith.constant 0 : index
    %c0_23 = arith.constant 0 : index
    %58 = vector.load %arg5[%c0_22, %c0_23] : memref<8x128xbf16, #tpu.memory_space<vmem>>, vector<8x128xbf16>
    tpu.vector_store %arg5[%c0_22, %c0_23], %57 {strides = array<i32>} : memref<8x128xbf16, #tpu.memory_space<vmem>>, vector<8x128xbf16>,
    %cst_24 = arith.constant 0.90044713 : f32
    %59 = vector.broadcast %cst_24 : f32 to vector<8x128xf32>
    %60 = arith.mulf %36, %59 : vector<8x128xf32>
    %cst_25 = arith.constant 0.434965521 : f32
    %61 = vector.broadcast %cst_25 : f32 to vector<8x128xf32>
    %62 = arith.mulf %46, %61 : vector<8x128xf32>
    %63 = arith.addf %60, %62 : vector<8x128xf32>
    %cst_26 = arith.constant -1.000000e+00 : f32
    %cst_27 = arith.constant 1.000000e+00 : f32
    %64 = vector.broadcast %cst_26 : f32 to vector<8x128xf32>
    %65 = arith.maximumf %64, %63 : vector<8x128xf32>
    %66 = vector.broadcast %cst_27 : f32 to vector<8x128xf32>
    %67 = arith.minimumf %66, %65 : vector<8x128xf32>
    %cst_28 = arith.constant 2.000000e-01 : f32
    %68 = vector.broadcast %cst_28 : f32 to vector<8x128xf32>
    %69 = arith.cmpf ogt, %36, %68 : vector<8x128xf32>
    %70 = arith.select %69, %67, %36 : vector<8x128xi1>, vector<8x128xf32>
    %cst_29 = arith.constant 6.400000e+01 : f32
    %71 = vector.broadcast %cst_29 : f32 to vector<8x128xf32>
    %72 = arith.mulf %71, %70 : vector<8x128xf32>
    %73 = arith.truncf %72 : vector<8x128xf32> to vector<8x128xbf16>
    %c0_30 = arith.constant 0 : index
    %c0_31 = arith.constant 0 : index
    %74 = vector.load %arg6[%c0_30, %c0_31] : memref<8x128xbf16, #tpu.memory_space<vmem>>, vector<8x128xbf16>
    tpu.vector_store %arg6[%c0_30, %c0_31], %73 {strides = array<i32>} : memref<8x128xbf16, #tpu.memory_space<vmem>>, vector<8x128xbf16>,
    return
  }
  func.func @transform_0(%arg0: i32, %arg1: i32) -> (i32, i32) {
    %c0_i32 = arith.constant 0 : i32
    %c0_i32_0 = arith.constant 0 : i32
    %c0_i32_1 = arith.constant 0 : i32
    return %c0_i32, %c0_i32_0 : i32, i32
  }
  func.func @transform_1(%arg0: i32, %arg1: i32) -> (i32, i32) {
    %c0_i32 = arith.constant 0 : i32
    %c0_i32_0 = arith.constant 0 : i32
    return %c0_i32, %arg0 : i32, i32
  }
  func.func @transform_2(%arg0: i32, %arg1: i32) -> (i32, i32) {
    %c0_i32 = arith.constant 0 : i32
    return %arg1, %arg0 : i32, i32
  }
  func.func @transform_3(%arg0: i32, %arg1: i32) -> (i32, i32) {
    %c0_i32 = arith.constant 0 : i32
    return %arg1, %arg0 : i32, i32
  }
  func.func @transform_4(%arg0: i32, %arg1: i32) -> (i32, i32) {
    %c0_i32 = arith.constant 0 : i32
    return %arg1, %arg0 : i32, i32
  }
  func.func @transform_5(%arg0: i32, %arg1: i32) -> (i32, i32) {
    %c0_i32 = arith.constant 0 : i32
    %c0_i32_0 = arith.constant 0 : i32
    return %arg1, %c0_i32 : i32, i32
  }
}

</mosaic_0001>

<llo_original>
// kernel: tpu_custom_call.1
$region0: #{tpu_custom_call.1}
  #allocation0 [shape = 'u32[]', space=smem, size = 0x4, offset = 0x4, fixed_abs, tag = 'smem constant byte address 0x4 - core index']
  #allocation1 [shape = 'u32[144,128]{1,0:T(1,128)}', space=vmem, size = 0x12000, scoped, tag = 'internal scratch']
  #allocation2 [shape = 'bf16[32,128]{1,0:T(16,128)(2,1)}', space=vmem, size = 0x2000, scoped, tag = 'scratch operand']
  %s0 = inlined_call_operand.hbm [shape: f32[8,32], index: 0, kind: input, shape index: {}]
  %s1 = inlined_call_operand.hbm [shape: bf16[32,128], index: 1, kind: input, shape index: {}]
  %s2 = inlined_call_operand.hbm [shape: bf16[8,128], index: 2, kind: output, shape index: {0}]
  %s3 = inlined_call_operand.hbm [shape: bf16[8,128], index: 3, kind: output, shape index: {1}]
  %s4 = inlined_call_operand.hbm [shape: bf16[8,128], index: 4, kind: output, shape index: {2}]
  %s5 = inlined_call_operand.vmem [shape: f32[8,1], index: 5, kind: output, shape index: {3}]
  %6 = xla_tuple %s2, %s3, %s4, %s5
  %s7 = sld [smem:[#allocation0]]
  $region54: #{tpu_custom_call.1} parent=0
    _
  %s9 = ssub.s32 1, %s7
  %s10 = scalar_select 0, %s9, %s7
  $region1: #{tpu_custom_call.1} parent=0
    #allocation3 [shape = 'u8[4096]{0}', space=vmem, size = 0x1000, scoped, tag = 'input window, operand 0, single buffered']
    #allocation4 [shape = 's32[1]{0}', space=sflag, size = 0x4, scoped, tag = 'scoped memory for tpu_custom_call.1']
    #allocation5 [shape = 's32[1]{0}', space=sflag, size = 0x4, scoped, tag = 'scoped memory for tpu_custom_call.1']
    #allocation6 [shape = 'u8[8192]{0}', space=vmem, size = 0x2000, scoped, tag = 'input window, operand 1, single buffered']
    #allocation7 [shape = 's32[1]{0}', space=sflag, size = 0x4, scoped, tag = 'scoped memory for tpu_custom_call.1']
    #allocation8 [shape = 'u8[2048]{0}', space=vmem, size = 0x800, scoped, tag = 'output window, operand 0, single buffered']
    #allocation9 [shape = 'u8[2048]{0}', space=vmem, size = 0x800, scoped, tag = 'output window, operand 1, single buffered']
    #allocation10 [shape = 's32[1]{0}', space=sflag, size = 0x4, scoped, tag = 'scoped memory for tpu_custom_call.1']
    #allocation11 [shape = 'u8[2048]{0}', space=vmem, size = 0x800, scoped, tag = 'output window, operand 2, single buffered']
    %11 = vsyncpa [#allocation4], 0
    %12 = vsyncpa [#allocation7], 0
    %13 = vsyncpa [#allocation5], 0
    %14 = vsyncpa [#allocation10], 0
    // Predicated region
    $region2: #{tpu_custom_call.1} parent=1 // pred_check
      _
    $region3: #{tpu_custom_call.1} parent=1 // pred_check_branch
      %16 = sbr.rel (0) target = $region5
    $region4: #{tpu_custom_call.1} parent=1 // pred_region
      %s18 = ssub.s32 128, 128
      %19 = vsyncadd [#allocation4], %s18
      %s21 = sshll.u32 [#allocation3], 4
      %s22 = int_to_ptr.vmem [resolvable:$true] %s21
      %24 = dma.hbm_to_vmem [thread:$0]  %s0, 128, %s22, [#allocation4]
    $region5: #{tpu_custom_call.1} parent=1 // pred_fallthru
      _
    // Predicated region
    $region6: #{tpu_custom_call.1} parent=1 // pred_check
      _
    $region7: #{tpu_custom_call.1} parent=1 // pred_check_branch
      %26 = sbr.rel (0) target = $region9
    $region8: #{tpu_custom_call.1} parent=1 // pred_region
      %s28 = ssub.s32 256, 256
      %29 = vsyncadd [#allocation7], %s28
      %s30 = sshll.u32 [#allocation6], 4
      %s31 = int_to_ptr.vmem [resolvable:$true] %s30
      %36 = dma.hbm_to_vmem [thread:$0]  %s1, 256, %s31, [#allocation7], 64, 64, 4
    $region9: #{tpu_custom_call.1} parent=1 // pred_fallthru
      _
    // Predicated region
    $region10: #{tpu_custom_call.1} parent=1 // pred_check
      _
    $region11: #{tpu_custom_call.1} parent=1 // pred_check_branch
      %38 = sbr.rel (0) target = $region13
    $region12: #{tpu_custom_call.1} parent=1 // pred_region
      %39 = dma.done [#allocation4], 128
    $region13: #{tpu_custom_call.1} parent=1 // pred_fallthru
      _
    // Predicated region
    $region14: #{tpu_custom_call.1} parent=1 // pred_check
      _
    $region15: #{tpu_custom_call.1} parent=1 // pred_check_branch
      %41 = sbr.rel (0) target = $region17
    $region16: #{tpu_custom_call.1} parent=1 // pred_region
      %42 = dma.done [#allocation7], 256
    $region17: #{tpu_custom_call.1} parent=1 // pred_fallthru
      _
    %p44 = scmp.eq.s32.totalorder 0, 0
    // Predicated region
    $region18: #{tpu_custom_call.1} parent=1 // pred_check
      %p45 = pneg %p44
    $region19: #{tpu_custom_call.1} parent=1 // pred_check_branch
      %47 = sbr.rel (%p45) target = $region21
    $region20: #{tpu_custom_call.1} parent=1 // pred_region
      %v48 = vld [vmem:[#allocation6] sm:$0xf]
      %v49 = vld [vmem:[#allocation6 + $0x4] sm:$0xf]
      %v50 = vld [vmem:[#allocation6 + $0x8] sm:$0xf]
      %v51 = vld [vmem:[#allocation6 + $0xc] sm:$0xf]
      %v52 = vunpack.c.l.bf16 %v48
      %v53 = vunpack.c.l.bf16 %v49
      %v54 = vunpack.c.l.bf16 %v50
      %v55 = vunpack.c.l.bf16 %v51
      %v56 = vmul.f32 %v52, %v52
      %v57 = vmul.f32 %v53, %v53
      %v58 = vmul.f32 %v54, %v54
      %v59 = vmul.f32 %v55, %v55
      %v60 = vadd.f32 %v56, %v57
      %v61 = vadd.f32 %v60, %v58
      %v62 = vadd.f32 %v61, %v59
      %v63 = vrot.slane %v62, 4
      %v64 = vadd.f32 %v62, %v63
      %v65 = vrot.slane %v64, 2
      %v66 = vadd.f32 %v64, %v65
      %v67 = vrot.slane %v66, 1
      %v68 = vadd.f32 %v66, %v67
      %v69 = vrsqrt.pop %v68
      %v70 = vmul.f32 %v68, %v69
      %vm71 = vcmp.eq.f32.partialorder %v68, inf
      %v72 = vsel %vm71, %v68, %v70
      %vm73 = vcmp.eq.f32.partialorder %v68, 0.0
      %v74 = vand.u32 %v68, 2147483648
      %v75 = vsel %vm73, %v74, %v72
      %v76 = vmax.f32 %v75, 1e-12
      %v77 = vrcp.pop %v76
      %v78 = vmul.f32 1.0, %v77
      %v79 = vmul.f32 %v52, %v78
      %v80 = vmul.f32 %v53, %v78
      %v81 = vmul.f32 %v54, %v78
      %v82 = vmul.f32 %v55, %v78
      %v83 = vpack.c.bf16 %v80, %v79
      %v84 = vpack.c.bf16 %v82, %v81
      %85 = vst [vmem:[#allocation2] sm:$0xff] %v83
      %86 = vst [vmem:[#allocation2 + $0x8] sm:$0xff] %v84
    $region21: #{tpu_custom_call.1} parent=1 // pred_fallthru
      _
    %s87 = smul.u32 0, 8
    %s88 = scalar_lea.vmem [#allocation3], %s87
    %v89 = vld [vmem:[%s88] sm:$0xff]
    %v90 = vmul.f32 %v89, %v89
    %vm91 = vcmask 261120
    %v92 = vsel %vm91, %v90, 0.0
    %93 = vadd.xlane.f32.xlu0 %v92
    %v94 = vpop.xlane.xlu0 %93
    %v95 = vrsqrt.pop %v94
    %v96 = vmul.f32 %v94, %v95
    %vm97 = vcmp.eq.f32.partialorder %v94, inf
    %v98 = vsel %vm97, %v94, %v96
    %vm99 = vcmp.eq.f32.partialorder %v94, 0.0
    %v100 = vand.u32 %v94, 2147483648
    %v101 = vsel %vm99, %v100, %v98
    %v102 = vmax.f32 %v101, 10.0
    %v103 = vmin.f32 %v102, 110.0
    %vm104 = vcmask 7168
    %105 = vst.msk [vmem:[%s5] sm:$0xff] %vm104, %v103
    %v106 = vsub.f32 %v103, 10.0
    %v107 = vmul.f32 %v106, 0.0035
    %v108 = vadd.f32 %v107, 0.45
    %v109 = vand.u32 2147483647, %v108
    %vm110 = vcmp.le.f32.partialorder %v109, 0.7853982
    %vm111 = vcmp.lt.s32.totalorder %v108, 0
    %v112 = vand.u32 %v108, 2139095040
    %v113 = vshrl.u32 %v112, 23
    %v114 = vsub.s32 %v113, 127
    %v115 = vand.u32 2147483647, %v108
    %v116 = vand.u32 %v115, 8388607
    %v117 = vor.u32 %v116, 8388608
    %v118 = vsub.s32 0, %v117
    %v119 = vadd.s32 %v114, 1
    %vm120 = vcmp.gt.s32.totalorder %v119, 0
    %v121 = vsel %vm120, %v119, 0
    %v122 = vshrl.u32 %v121, 5
    %v123 = vand.u32 %v121, 31
    %v124 = vsub.s32 32, %v123
    %v125 = vshrl.u32 683565275, %v124
    %v126 = vshll.u32 683565275, %v123
    %v127 = vshrl.u32 2475754826, %v124
    %v128 = vor.u32 %v126, %v127
    %v129 = vshll.u32 2475754826, %v123
    %v130 = vshrl.u32 2131351028, %v124
    %v131 = vor.u32 %v129, %v130
    %v132 = vshll.u32 2131351028, %v123
    %v133 = vshrl.u32 2102212464, %v124
    %v134 = vor.u32 %v132, %v133
    %v135 = vshll.u32 2102212464, %v123
    %v136 = vshrl.u32 920167782, %v124
    %v137 = vor.u32 %v135, %v136
    %v138 = vshll.u32 920167782, %v123
    %v139 = vshrl.u32 1326507024, %v124
    %v140 = vor.u32 %v138, %v139
    %vm141 = vcmp.lt.s32.totalorder %v122, 1
    %vm142 = vcmp.lt.s32.totalorder %v122, 2
    %vm143 = vcmp.lt.s32.totalorder %v122, 3
    %vm144 = vcmp.lt.s32.totalorder %v122, 4
    %v145 = vsel %vm141, %v125, %v128
    %v146 = vsel %vm144, %v134, 2102212464
    %v147 = vsel %vm143, %v131, %v146
    %v148 = vsel %vm142, %v145, %v147
    %v149 = vsel %vm141, %v128, %v131
    %v150 = vsel %vm144, %v137, 920167782
    %v151 = vsel %vm143, %v134, %v150
    %v152 = vsel %vm142, %v149, %v151
    %v153 = vsel %vm141, %v131, %v134
    %v154 = vsel %vm144, %v140, 1326507024
    %v155 = vsel %vm143, %v137, %v154
    %v156 = vsel %vm142, %v153, %v155
    %v157 = vshll.u32 %v117, 8
    %v158 = vmul.u32.u64.compose %v157, %v156
    %v159 = vextract.low.u32 %v158
    %v160 = vextract.high.u32 %v158
    %v161 = vmul.u32.u64.compose %v157, %v152
    %v162 = vextract.low.u32 %v161
    %v163 = vextract.high.u32 %v161
    %v164 = vmul.u32 %v157, %v148
    %v165 = vadd.s32 %v160, %v162
    %vm166 = vc.u32 %v160, %v162
    %v167 = vadd.s32 %v163, 1
    %v168 = vsel %vm166, %v167, %v163
    %v169 = vadd.s32 %v164, %v168
    %v170 = vadd.s32 %v169, 536870912
    %v171 = vshrl.u32 %v170, 30
    %v172 = vshll.u32 %v171, 30
    %v173 = vsub.s32 %v169, %v172
    %vm174 = vcmp.lt.s32.totalorder %v173, 0
    %v175 = vsub.s32 0, %v173
    %v176 = vsel %vm174, %v175, %v173
    %v177 = vclz %v176
    %v178 = vsub.s32 %v177, 2
    %vm179 = vcmp.gt.s32.totalorder 0, %v178
    %v180 = vsel %vm179, 0, %v178
    %v181 = vsub.s32 32, %v180
    %v182 = vshll.u32 %v173, %v180
    %v183 = vshrl.u32 %v165, %v181
    %v184 = vor.u32 %v182, %v183
    %v185 = vsub.s32 4294967266, %v180
    %v186 = vadd.s32 %v185, 127
    %v187 = vshll.u32 %v186, 23
    %v188 = vor.u32 4788187, %v187
    %v189 = vand.u32 2147483647, %v188
    %v191 = vcvt.s32.f32 %v184
    %v192 = vmul.f32 %v191, %v189
    %v193 = vxor.u32 %v192, 2147483648
    %v194 = vsel %vm111, %v193, %v192
    %v195 = vsub.s32 4, %v171
    %v196 = vsel %vm111, %v195, %v171
    %v197 = vsel %vm110, %v108, %v194
    %v198 = vsel %vm110, 0, %v196
    %v199 = vcosq.f32.pop %v197
    %v200 = vsinq.f32.pop %v197
    %vm201 = vweird.f32 %v108
    %v202 = vand.u32 %v198, 3
    %vm203 = vcmp.lt.s32.totalorder %v202, 2
    %vm204 = vcmp.eq.s32.totalorder %v202, 0
    %v205 = vxor.u32 %v200, 2147483648
    %v206 = vsel %vm204, %v199, %v205
    %vm207 = vcmp.eq.s32.totalorder %v202, 2
    %v208 = vxor.u32 %v199, 2147483648
    %v209 = vsel %vm207, %v208, %v200
    %v210 = vsel %vm203, %v206, %v209
    %v211 = vsel %vm201, nan, %v210
    %v212 = vand.u32 2147483647, %v108
    %vm213 = vcmp.le.f32.partialorder %v212, 0.7853982
    %vm214 = vcmp.lt.s32.totalorder %v108, 0
    %v215 = vand.u32 %v108, 2139095040
    %v216 = vshrl.u32 %v215, 23
    %v217 = vsub.s32 %v216, 127
    %v218 = vand.u32 2147483647, %v108
    %v219 = vand.u32 %v218, 8388607
    %v220 = vor.u32 %v219, 8388608
    %v221 = vsub.s32 0, %v220
    %v222 = vadd.s32 %v217, 1
    %vm223 = vcmp.gt.s32.totalorder %v222, 0
    %v224 = vsel %vm223, %v222, 0
    %v225 = vshrl.u32 %v224, 5
    %v226 = vand.u32 %v224, 31
    %v227 = vsub.s32 32, %v226
    %v228 = vshrl.u32 683565275, %v227
    %v229 = vshll.u32 683565275, %v226
    %v230 = vshrl.u32 2475754826, %v227
    %v231 = vor.u32 %v229, %v230
    %v232 = vshll.u32 2475754826, %v226
    %v233 = vshrl.u32 2131351028, %v227
    %v234 = vor.u32 %v232, %v233
    %v235 = vshll.u32 2131351028, %v226
    %v236 = vshrl.u32 2102212464, %v227
    %v237 = vor.u32 %v235, %v236
    %v238 = vshll.u32 2102212464, %v226
    %v239 = vshrl.u32 920167782, %v227
    %v240 = vor.u32 %v238, %v239
    %v241 = vshll.u32 920167782, %v226
    %v242 = vshrl.u32 1326507024, %v227
    %v243 = vor.u32 %v241, %v242
    %vm244 = vcmp.lt.s32.totalorder %v225, 1
    %vm245 = vcmp.lt.s32.totalorder %v225, 2
    %vm246 = vcmp.lt.s32.totalorder %v225, 3
    %vm247 = vcmp.lt.s32.totalorder %v225, 4
    %v248 = vsel %vm244, %v228, %v231
    %v249 = vsel %vm247, %v237, 2102212464
    %v250 = vsel %vm246, %v234, %v249
    %v251 = vsel %vm245, %v248, %v250
    %v252 = vsel %vm244, %v231, %v234
    %v253 = vsel %vm247, %v240, 920167782
    %v254 = vsel %vm246, %v237, %v253
    %v255 = vsel %vm245, %v252, %v254
    %v256 = vsel %vm244, %v234, %v237
    %v257 = vsel %vm247, %v243, 1326507024
    %v258 = vsel %vm246, %v240, %v257
    %v259 = vsel %vm245, %v256, %v258
    %v260 = vshll.u32 %v220, 8
    %v261 = vmul.u32.u64.compose %v260, %v259
    %v262 = vextract.low.u32 %v261
    %v263 = vextract.high.u32 %v261
    %v264 = vmul.u32.u64.compose %v260, %v255
    %v265 = vextract.low.u32 %v264
    %v266 = vextract.high.u32 %v264
    %v267 = vmul.u32 %v260, %v251
    %v268 = vadd.s32 %v263, %v265
    %vm269 = vc.u32 %v263, %v265
    %v270 = vadd.s32 %v266, 1
    %v271 = vsel %vm269, %v270, %v266
    %v272 = vadd.s32 %v267, %v271
    %v273 = vadd.s32 %v272, 536870912
    %v274 = vshrl.u32 %v273, 30
    %v275 = vshll.u32 %v274, 30
    %v276 = vsub.s32 %v272, %v275
    %vm277 = vcmp.lt.s32.totalorder %v276, 0
    %v278 = vsub.s32 0, %v276
    %v279 = vsel %vm277, %v278, %v276
    %v280 = vclz %v279
    %v281 = vsub.s32 %v280, 2
    %vm282 = vcmp.gt.s32.totalorder 0, %v281
    %v283 = vsel %vm282, 0, %v281
    %v284 = vsub.s32 32, %v283
    %v285 = vshll.u32 %v276, %v283
    %v286 = vshrl.u32 %v268, %v284
    %v287 = vor.u32 %v285, %v286
    %v288 = vsub.s32 4294967266, %v283
    %v289 = vadd.s32 %v288, 127
    %v290 = vshll.u32 %v289, 23
    %v291 = vor.u32 4788187, %v290
    %v292 = vand.u32 2147483647, %v291
    %v294 = vcvt.s32.f32 %v287
    %v295 = vmul.f32 %v294, %v292
    %v296 = vxor.u32 %v295, 2147483648
    %v297 = vsel %vm214, %v296, %v295
    %v298 = vsub.s32 4, %v274
    %v299 = vsel %vm214, %v298, %v274
    %v300 = vsel %vm213, %v108, %v297
    %v301 = vsel %vm213, 0, %v299
    %v302 = vcosq.f32.pop %v300
    %v303 = vsinq.f32.pop %v300
    %vm304 = vweird.f32 %v108
    %v305 = vadd.s32 %v301, 3
    %v306 = vand.u32 %v305, 3
    %vm307 = vcmp.lt.s32.totalorder %v306, 2
    %vm308 = vcmp.eq.s32.totalorder %v306, 0
    %v309 = vxor.u32 %v303, 2147483648
    %v310 = vsel %vm308, %v302, %v309
    %vm311 = vcmp.eq.s32.totalorder %v306, 2
    %v312 = vxor.u32 %v302, 2147483648
    %v313 = vsel %vm311, %v312, %v303
    %v314 = vsel %vm307, %v310, %v313
    %v315 = vsel %vm304, nan, %v314
    %v316 = vmax.f32 %v101, 1e-12
    %v317 = vrcp.pop %v316
    %v318 = vmul.f32 1.0, %v317
    %v319 = vmul.f32 %v89, %v318
    %v320 = vpack.c.bf16 %v319, %v319
    %v321 = vld [vmem:[#allocation2] sm:$0xff]
    %v322 = vld [vmem:[#allocation2 + $0x8] sm:$0xff]
    %v324 = vsel %vm91, %v320, 0
    %326 = vmatprep.subr.bf16.mxu0 0
    %327 = vmatpush1.bf16.msra.mxu0 %v321
    %328 = vmatprep.subr.bf16.mxu0 0
    %329 = vmatpush1.bf16.msra.mxu0 %v322
    %330 = vmatprep.subr.bf16.mxu0 0
    %331 = vmatpush1.bf16.msra.mxu0 0
    %332 = vmatprep.subr.bf16.mxu0 0
    %333 = vmatpush1.bf16.msra.mxu0 0
    %334 = vmatprep.subr.bf16.mxu0 0
    %335 = vmatpush1.bf16.msra.mxu0 0
    %336 = vmatprep.subr.bf16.mxu0 0
    %337 = vmatpush1.bf16.msra.mxu0 0
    %338 = vmatprep.subr.bf16.mxu0 0
    %339 = vmatpush1.bf16.msra.mxu0 0
    %340 = vmatprep.subr.bf16.mxu0 0
    %341 = vmatpush1.bf16.msra.mxu0 0
    %342 = vmatprep.subr.bf16.mxu0 0
    %343 = vmatpush1.bf16.msra.mxu0 0
    %344 = vmatprep.subr.bf16.mxu0 0
    %345 = vmatpush1.bf16.msra.mxu0 0
    %346 = vmatprep.subr.bf16.mxu0 0
    %347 = vmatpush1.bf16.msra.mxu0 0
    %348 = vmatprep.subr.bf16.mxu0 0
    %349 = vmatpush1.bf16.msra.mxu0 0
    %350 = vmatprep.subr.bf16.mxu0 0
    %351 = vmatpush1.bf16.msra.mxu0 0
    %352 = vmatprep.subr.bf16.mxu0 0
    %353 = vmatpush1.bf16.msra.mxu0 0
    %354 = vmatprep.subr.bf16.mxu0 0
    %355 = vmatpush1.bf16.msra.mxu0 0
    %356 = vmatprep.subr.bf16.mxu0 0
    %357 = vmatpush1.bf16.msra.mxu0 0
    %358 = vmatprep.mubr.bf16.mxu0 0
    %359 = vmatmul.mubr.bf16.gmra.mrb[0].mxu0 %v324
    %v360 = vpop.f32.mrb[0].mxu0
    %v361 = vadd.f32 0.0, %v360
    %v362 = vpop.f32.mrb[0].mxu0
    %v363 = vpop.f32.mrb[0].mxu0
    %v364 = vpop.f32.mrb[0].mxu0
    %365 = vdwg.mxu0
    %v366 = vmax.f32 %v361, -1.0
    %v367 = vmin.f32 %v366, 1.0
    %v368 = vmul.f32 %v367, 64.0
    %v369 = vpack.c.bf16 %v368, %v368
    %370 = vst [vmem:[#allocation8] sm:$0xf] %v369
    %v371 = vmul.f32 %v367, %v367
    %v372 = vsub.f32 1.0, %v371
    %v373 = vmax.f32 %v372, 0.0
    %v374 = vrsqrt.pop %v373
    %v375 = vmul.f32 %v373, %v374
    %vm376 = vcmp.eq.f32.partialorder %v373, inf
    %v377 = vsel %vm376, %v373, %v375
    %vm378 = vcmp.eq.f32.partialorder %v373, 0.0
    %v379 = vand.u32 %v373, 2147483648
    %v380 = vsel %vm378, %v379, %v377
    %v381 = vmul.f32 %v367, %v211
    %v382 = vmul.f32 %v380, %v315
    %v383 = vsub.f32 %v381, %v382
    %vm384 = vcmp.gt.f32.partialorder %v367, 0.0
    %v385 = vsel %vm384, %v383, %v367
    %v386 = vmul.f32 %v385, 64.0
    %v387 = vpack.c.bf16 %v386, %v386
    %388 = vst [vmem:[#allocation9] sm:$0xf] %v387
    %v389 = vmul.f32 %v367, 0.90044713
    %v390 = vmul.f32 %v380, 0.43496552
    %v391 = vadd.f32 %v389, %v390
    %v392 = vmax.f32 %v391, -1.0
    %v393 = vmin.f32 %v392, 1.0
    %vm394 = vcmp.gt.f32.partialorder %v367, 0.2
    %v395 = vsel %vm394, %v393, %v367
    %v396 = vmul.f32 %v395, 64.0
    %v397 = vpack.c.bf16 %v396, %v396
    %398 = vst [vmem:[#allocation11] sm:$0xf] %v397
    // Predicated region
    $region22: #{tpu_custom_call.1} parent=1 // pred_check
      _
    $region23: #{tpu_custom_call.1} parent=1 // pred_check_branch
      %400 = sbr.rel (0) target = $region25
    $region24: #{tpu_custom_call.1} parent=1 // pred_region
      %s402 = ssub.s32 64, 64
      %403 = vsyncadd [#allocation5], %s402
      %s405 = sshll.u32 [#allocation8], 4
      %s406 = int_to_ptr.vmem [resolvable:$true] %s405
      %408 = dma.vmem_to_hbm [thread:$0]  %s406, 64, %s2, [#allocation5]
    $region25: #{tpu_custom_call.1} parent=1 // pred_fallthru
      _
    // Predicated region
    $region26: #{tpu_custom_call.1} parent=1 // pred_check
      _
    $region27: #{tpu_custom_call.1} parent=1 // pred_check_branch
      %410 = sbr.rel (0) target = $region29
    $region28: #{tpu_custom_call.1} parent=1 // pred_region
      %s412 = ssub.s32 64, 64
      %413 = vsyncadd [#allocation10], %s412
      %s415 = sshll.u32 [#allocation9], 4
      %s416 = int_to_ptr.vmem [resolvable:$true] %s415
      %418 = dma.vmem_to_hbm [thread:$0]  %s416, 64, %s3, [#allocation10]
    $region29: #{tpu_custom_call.1} parent=1 // pred_fallthru
      _
    // Predicated region
    $region30: #{tpu_custom_call.1} parent=1 // pred_check
      _
    $region31: #{tpu_custom_call.1} parent=1 // pred_check_branch
      %420 = sbr.rel (0) target = $region33
    $region32: #{tpu_custom_call.1} parent=1 // pred_region
      %s422 = ssub.s32 64, 64
      %423 = vsyncadd [#allocation10], %s422
      %s425 = sshll.u32 [#allocation11], 4
      %s426 = int_to_ptr.vmem [resolvable:$true] %s425
      %428 = dma.vmem_to_hbm [thread:$0]  %s426, 64, %s4, [#allocation10]
    $region33: #{tpu_custom_call.1} parent=1 // pred_fallthru
      _
    // Predicated region
    $region34: #{tpu_custom_call.1} parent=1 // pred_check
      _
    $region35: #{tpu_custom_call.1} parent=1 // pred_check_branch
      %430 = sbr.rel (0) target = $region37
    $region36: #{tpu_custom_call.1} parent=1 // pred_region
      _
    $region37: #{tpu_custom_call.1} parent=1 // pred_fallthru
      _
    // Predicated region
    $region38: #{tpu_custom_call.1} parent=1 // pred_check
      _
    $region39: #{tpu_custom_call.1} parent=1 // pred_check_branch
      %432 = sbr.rel (0) target = $region41
    $region40: #{tpu_custom_call.1} parent=1 // pred_region
      %433 = dma.done [#allocation5], 64
    $region41: #{tpu_custom_call.1} parent=1 // pred_fallthru
      _
    // Predicated region
    $region42: #{tpu_custom_call.1} parent=1 // pred_check
      _
    $region43: #{tpu_custom_call.1} parent=1 // pred_check_branch
      %435 = sbr.rel (0) target = $region45
    $region44: #{tpu_custom_call.1} parent=1 // pred_region
      %436 = dma.done [#allocation10], 64
    $region45: #{tpu_custom_call.1} parent=1 // pred_fallthru
      _
    // Predicated region
    $region46: #{tpu_custom_call.1} parent=1 // pred_check
      _
    $region47: #{tpu_custom_call.1} parent=1 // pred_check_branch
      %438 = sbr.rel (0) target = $region49
    $region48: #{tpu_custom_call.1} parent=1 // pred_region
      %439 = dma.done [#allocation10], 64
    $region49: #{tpu_custom_call.1} parent=1 // pred_fallthru
      _
    // Predicated region
    $region50: #{tpu_custom_call.1} parent=1 // pred_check
      _
    $region51: #{tpu_custom_call.1} parent=1 // pred_check_branch
      %441 = sbr.rel (0) target = $region53
    $region52: #{tpu_custom_call.1} parent=1 // pred_region
      _
    $region53: #{tpu_custom_call.1} parent=1 // pred_fallthru
      _
    %442 = vsyncpa [#allocation4], 1
    %443 = vsyncpa [#allocation7], 1
    %444 = vsyncpa [#allocation5], 1
    %445 = vsyncpa [#allocation10], 1

</llo_original>
